<compile_context>
chip_gen: v6e
topology: v6e:2x2x1
jax: 0.10.0
libtpu: 0.0.40
codegen_flags: <defaults>
</compile_context>

<pallas_src>
import jax
import jax.numpy as jnp
from jax.experimental import pallas as pl
from jax.experimental.pallas import tpu as pltpu

_MIB = 1024 * 1024


def _round_up(v, m):
    return ((v + m - 1) // m) * m


def _cdiv(a, b):
    return (a + b - 1) // b


def _vmem_capacity_bytes():
    """Physical VMEM per TensorCore; safe 64 MiB (v7x) floor if query fails."""
    try:
        info = pltpu.get_tpu_info()
        return int(getattr(info, "vmem_capacity_bytes", 64 * _MIB))
    except Exception:
        return 64 * _MIB


def _pick_tk(K, cap):
    """Pick the K tile. Prefer a tile that divides K exactly (no padding);
    fall back to `cap` + zero-padding of the reduction dim."""
    if K <= cap:
        return K, K
    for step in (256, 128):          # 256-multiples feed the 256x256 MXU best
        tk = (cap // step) * step
        while tk >= step:
            if K % tk == 0:
                return tk, K
            tk -= step
    return cap, _round_up(K, cap)


def _linear_kernel_f32_out(x_ref, w_ref, b_ref, o_ref):
    # f32 output: accumulate directly into the resident output block
    # (same block index across the K axis) -- no scratch, no final copy.
    k = pl.program_id(2)

    @pl.when(k == 0)
    def _():
        o_ref[...] = jnp.broadcast_to(b_ref[...].astype(jnp.float32),
                                      o_ref.shape)

    o_ref[...] += jnp.dot(x_ref[...], w_ref[...],
                          preferred_element_type=jnp.float32)


def _linear_kernel_acc(x_ref, w_ref, b_ref, o_ref, acc_ref):
    # Non-f32 output: f32 VMEM accumulator, bias folded into the init,
    # single cast at the final K step.
    k = pl.program_id(2)

    @pl.when(k == 0)
    def _():
        acc_ref[...] = jnp.broadcast_to(b_ref[...].astype(jnp.float32),
                                        acc_ref.shape)

    acc_ref[...] += jnp.dot(x_ref[...], w_ref[...],
                            preferred_element_type=jnp.float32)

    @pl.when(k == pl.num_programs(2) - 1)
    def _():
        o_ref[...] = acc_ref[...].astype(o_ref.dtype)


def linear_forward(x, weight_t, bias):
    """y = x @ weight_t + bias over the last dim of x.

    x:        (..., in_features)
    weight_t: (in_features, out_features)  -- pre-transposed once at init.
    bias:     (out_features,)
    """
    K, N = weight_t.shape
    assert x.shape[-1] == K

    leading = x.shape[:-1]
    m = 1
    for d in leading:
        m *= d
    x2d = x.reshape(m, K)

    out_dtype = x.dtype
    itemsize = jnp.dtype(x.dtype).itemsize
    sub = {4: 8, 2: 16, 1: 32}.get(itemsize, 8)   # min sublane alignment

    # ---- generation-aware tile caps & VMEM budget -------------------------
    vmem_cap = _vmem_capacity_bytes()
    big_vmem = vmem_cap >= 96 * _MIB              # v5e/v6e: 128 MiB; v7x: 64 MiB
    tm_cap = 512
    tn_cap = 1024 if big_vmem else 512
    tk_cap = 1024

    # M tile: balance tiles over the actual row count so padding waste is
    # small (single tile whenever m <= tm_cap).
    m_tiles = _cdiv(m, tm_cap)
    tm = _round_up(_cdiv(m, m_tiles), sub)

    # N tile: full dim when it fits, else 256-aligned balanced tiles.
    if N <= tn_cap:
        tn = N
    else:
        n_tiles = _cdiv(N, tn_cap)
        tn = _round_up(_cdiv(N, n_tiles), 256)

    # K tile: exact divisor preferred; zero-pad the reduction dim otherwise.
    tk, k_pad = _pick_tk(K, tk_cap)

    w2d = weight_t
    if k_pad != K:
        # Reduction-dim remainder MUST be zero-filled (garbage would corrupt
        # valid outputs). M/N remainders need no padding: Pallas masks the
        # out-of-bounds part of boundary output blocks.
        x2d = jnp.pad(x2d, ((0, 0), (0, k_pad - K)))
        w2d = jnp.pad(w2d, ((0, k_pad - K), (0, 0)))
    b2d = bias.reshape(1, N)

    grid_m = _cdiv(m, tm)
    grid_n = _cdiv(N, tn)
    grid_k = k_pad // tk

    out_is_f32 = out_dtype == jnp.float32
    if out_is_f32:
        kernel = _linear_kernel_f32_out
        scratch_shapes = []
    else:
        kernel = _linear_kernel_acc
        scratch_shapes = [pltpu.VMEM((tm, tn), jnp.float32)]

    # Megacore (v7x): the leading parallel grid axis is sharded across the
    # two TensorCores -- put the axis with the most tiles first so neither
    # core idles on skinny-M calls. K (reduction) stays innermost.
    if grid_n > grid_m:
        grid = (grid_n, grid_m, grid_k)
        x_map = lambda j, i, k: (i, k)
        w_map = lambda j, i, k: (k, j)
        b_map = lambda j, i, k: (0, j)
        o_map = lambda j, i, k: (i, j)
    else:
        grid = (grid_m, grid_n, grid_k)
        x_map = lambda i, j, k: (i, k)
        w_map = lambda i, j, k: (k, j)
        b_map = lambda i, j, k: (0, j)
        o_map = lambda i, j, k: (i, j)

    # VMEM footprint (double-buffered x/w/out + optional f32 acc + bias).
    acc_bytes = 0 if out_is_f32 else tm * tn * 4
    footprint = (2 * (tm * tk + tk * tn + tm * tn) * itemsize
                 + acc_bytes + 2 * tn * itemsize)
    budget = (110 * _MIB) if big_vmem else (52 * _MIB)
    budget = min(budget, max(vmem_cap - 12 * _MIB, 32 * _MIB))
    vmem_limit = int(min(budget, max(footprint + 16 * _MIB, 32 * _MIB)))

    cost = pl.CostEstimate(
        flops=2 * m * k_pad * N,
        transcendentals=0,
        bytes_accessed=(m * k_pad + k_pad * N + N + m * N) * itemsize)

    out = pl.pallas_call(
        kernel,
        out_shape=jax.ShapeDtypeStruct((m, N), out_dtype),
        grid_spec=pltpu.PrefetchScalarGridSpec(
            num_scalar_prefetch=0,
            grid=grid,
            in_specs=[
                pl.BlockSpec((tm, tk), x_map),
                pl.BlockSpec((tk, tn), w_map),
                pl.BlockSpec((1, tn), b_map),
            ],
            out_specs=pl.BlockSpec((tm, tn), o_map),
            scratch_shapes=scratch_shapes,
        ),
        compiler_params=pltpu.CompilerParams(
            dimension_semantics=("parallel", "parallel", "arbitrary"),
            vmem_limit_bytes=vmem_limit),
        cost_estimate=cost,
    )(x2d, w2d, b2d)

    return out.reshape(*leading, N)


def init_linear_params(key, in_features, out_features, dtype=jnp.float32):
    """torch.nn.Linear-style U(-1/sqrt(in), 1/sqrt(in)) init.

    The weight is stored pre-transposed as (in_features, out_features) so the
    forward pass never pays a per-call XLA transpose of the weight.
    """
    kw, kb = jax.random.split(key)
    bound = 1.0 / (in_features ** 0.5)
    weight_t = jax.random.uniform(
        kw, (in_features, out_features), dtype=dtype, minval=-bound, maxval=bound)
    bias = jax.random.uniform(
        kb, (out_features,), dtype=dtype, minval=-bound, maxval=bound)
    return weight_t, bias


if __name__ == "__main__":
    key = jax.random.PRNGKey(0)
    k_x1, k_p1, k_x2, k_p2, k_x3, k_p3 = jax.random.split(key, 6)

    fwd = jax.jit(linear_forward)

    # --- test 1: small 3-D input -> flatten-leading-dims path (f32) --------
    in1, out1 = 32, 64
    x1 = jax.random.normal(k_x1, (2, 8, in1), dtype=jnp.float32)
    w1_t, b1 = init_linear_params(k_p1, in1, out1)
    y1 = jax.block_until_ready(fwd(x1, w1_t, b1))
    y1_ref = (jnp.dot(x1.reshape(-1, in1), w1_t,
                      precision=jax.lax.Precision.HIGHEST) + b1
              ).reshape(2, 8, out1)
    assert y1.shape == (2, 8, out1)
    assert jnp.allclose(y1, y1_ref, atol=2e-4, rtol=2e-4)

    # --- test 2: 2-D f32 input, split-K grid (tk=768, 2 steps) and a masked
    #             partial M boundary block (m=300 -> tm=304) -----------------
    m2, in2, out2 = 300, 1536, 512
    x2 = jax.random.normal(k_x2, (m2, in2), dtype=jnp.float32)
    w2_t, b2 = init_linear_params(k_p2, in2, out2)
    y2 = jax.block_until_ready(fwd(x2, w2_t, b2))
    y2_ref = jnp.dot(x2, w2_t, precision=jax.lax.Precision.HIGHEST) + b2
    assert y2.shape == (m2, out2)
    assert jnp.allclose(y2, y2_ref, atol=5e-3, rtol=5e-3)

    # --- test 3: bf16 input/params -> exercises the f32-scratch-acc kernel --
    m3, in3, out3 = 64, 256, 128
    x3 = jax.random.normal(k_x3, (m3, in3), dtype=jnp.float32).astype(jnp.bfloat16)
    w3_t, b3 = init_linear_params(k_p3, in3, out3, dtype=jnp.bfloat16)
    y3 = jax.block_until_ready(fwd(x3, w3_t, b3))
    y3_ref = (jnp.dot(x3.astype(jnp.float32), w3_t.astype(jnp.float32),
                      precision=jax.lax.Precision.HIGHEST)
              + b3.astype(jnp.float32))
    assert y3.shape == (m3, out3)
    assert jnp.allclose(y3.astype(jnp.float32), y3_ref, atol=3e-2, rtol=3e-2)

    print("KERNEL_OK")
</pallas_src>

<mosaic_0001>
module attributes {stable_mosaic.version = 11 : i64} {
  func.func @_linear_kernel_f32_out(%arg0: i32, %arg1: i32, %arg2: i32, %arg3: memref<16x32xf32, #tpu.memory_space<vmem>>, %arg4: memref<32x64xf32, #tpu.memory_space<vmem>>, %arg5: memref<1x64xf32, #tpu.memory_space<vmem>>, %arg6: memref<16x64xf32, #tpu.memory_space<vmem>>) attributes {dimension_semantics = [#tpu.dimension_semantics<parallel>, #tpu.dimension_semantics<parallel>, #tpu.dimension_semantics<arbitrary>], iteration_bounds = array<i64: 1, 1, 1>, scalar_prefetch = 0 : i64, scratch_operands = 0 : i64, tpu.core_type = #tpu.core_type<tc>, window_params = [{transform_indices = @transform_0, window_bounds = array<i64: 16, 32>}, {transform_indices = @transform_1, window_bounds = array<i64: 32, 64>}, {transform_indices = @transform_2, window_bounds = array<i64: 1, 64>}, {transform_indices = @transform_3, window_bounds = array<i64: 16, 64>}]} {
    %c0_i32 = arith.constant 0 : i32
    %0 = arith.cmpi eq, %arg2, %c0_i32 : i32
    %1 = arith.extui %0 : i1 to i32
    %c0_i32_0 = arith.constant 0 : i32
    %2 = arith.cmpi ne, %1, %c0_i32_0 : i32
    scf.if %2 {
      %c0_8 = arith.constant 0 : index
      %c0_9 = arith.constant 0 : index
      %9 = vector.load %arg5[%c0_8, %c0_9] : memref<1x64xf32, #tpu.memory_space<vmem>>, vector<1x64xf32>
      %10 = vector.shape_cast %9 : vector<1x64xf32> to vector<1x64xf32>
      %11 = vector.broadcast %10 : vector<1x64xf32> to vector<16x64xf32>
      %c0_10 = arith.constant 0 : index
      %c0_11 = arith.constant 0 : index
      %12 = vector.load %arg6[%c0_10, %c0_11] : memref<16x64xf32, #tpu.memory_space<vmem>>, vector<16x64xf32>
      tpu.vector_store %arg6[%c0_10, %c0_11], %11 {strides = array<i32>} : memref<16x64xf32, #tpu.memory_space<vmem>>, vector<16x64xf32>,
    } else {
    }
    %c0 = arith.constant 0 : index
    %c0_1 = arith.constant 0 : index
    %3 = vector.load %arg6[%c0, %c0_1] : memref<16x64xf32, #tpu.memory_space<vmem>>, vector<16x64xf32>
    %c0_2 = arith.constant 0 : index
    %c0_3 = arith.constant 0 : index
    %4 = vector.load %arg3[%c0_2, %c0_3] : memref<16x32xf32, #tpu.memory_space<vmem>>, vector<16x32xf32>
    %c0_4 = arith.constant 0 : index
    %c0_5 = arith.constant 0 : index
    %5 = vector.load %arg4[%c0_4, %c0_5] : memref<32x64xf32, #tpu.memory_space<vmem>>, vector<32x64xf32>
    %cst = arith.constant dense<0.000000e+00> : vector<16x64xf32>
    %6 = tpu.matmul %4, %5, %cst {dimension_numbers = #tpu.dot_dimension_numbers<[1], [0], [0], [1], [0, 0, 1, 1], [], []>} : vector<16x32xf32>, vector<32x64xf32>, vector<16x64xf32> -> vector<16x64xf32>
    %7 = arith.addf %3, %6 : vector<16x64xf32>
    %c0_6 = arith.constant 0 : index
    %c0_7 = arith.constant 0 : index
    %8 = vector.load %arg6[%c0_6, %c0_7] : memref<16x64xf32, #tpu.memory_space<vmem>>, vector<16x64xf32>
    tpu.vector_store %arg6[%c0_6, %c0_7], %7 {strides = array<i32>} : memref<16x64xf32, #tpu.memory_space<vmem>>, vector<16x64xf32>,
    return
  }
  func.func @transform_0(%arg0: i32, %arg1: i32, %arg2: i32) -> (i32, i32) {
    %c0_i32 = arith.constant 0 : i32
    return %arg0, %arg2 : i32, i32
  }
  func.func @transform_1(%arg0: i32, %arg1: i32, %arg2: i32) -> (i32, i32) {
    %c0_i32 = arith.constant 0 : i32
    return %arg2, %arg1 : i32, i32
  }
  func.func @transform_2(%arg0: i32, %arg1: i32, %arg2: i32) -> (i32, i32) {
    %c0_i32 = arith.constant 0 : i32
    %c0_i32_0 = arith.constant 0 : i32
    return %c0_i32, %arg1 : i32, i32
  }
  func.func @transform_3(%arg0: i32, %arg1: i32, %arg2: i32) -> (i32, i32) {
    %c0_i32 = arith.constant 0 : i32
    return %arg0, %arg1 : i32, i32
  }
}

</mosaic_0001>

<llo_original>
// kernel: linear_forward.1
$region0: #{linear_forward.1}
  #allocation0 [shape = 'u32[]', space=smem, size = 0x4, offset = 0x4, fixed_abs, tag = 'smem constant byte address 0x4 - core index']
  #allocation1 [shape = 'u32[144,128]{1,0:T(1,128)}', space=vmem, size = 0x12000, scoped, tag = 'internal scratch']
  %s0 = inlined_call_operand.hbm [shape: f32[16,32], index: 0, kind: input, shape index: {}]
  %s1 = inlined_call_operand.hbm [shape: f32[32,64], index: 1, kind: input, shape index: {}]
  %s2 = inlined_call_operand.vmem [shape: f32[1,64], index: 2, kind: input, shape index: {}]
  %s3 = inlined_call_operand.hbm [shape: f32[16,64], index: 3, kind: output, shape index: {}]
  %s4 = sld [smem:[#allocation0]]
  $region34: #{linear_forward.1} parent=0
    _
  %s6 = ssub.s32 1, %s4
  %s7 = scalar_select 0, %s6, %s4
  $region1: #{linear_forward.1} parent=0
    #allocation2 [shape = 'u8[8192]{0}', space=vmem, size = 0x2000, scoped, tag = 'input window, operand 0, single buffered']
    #allocation3 [shape = 's32[1]{0}', space=sflag, size = 0x4, scoped, tag = 'scoped memory for linear_forward.1']
    #allocation4 [shape = 's32[1]{0}', space=sflag, size = 0x4, scoped, tag = 'scoped memory for linear_forward.1']
    #allocation5 [shape = 'u8[16384]{0}', space=vmem, size = 0x4000, scoped, tag = 'input window, operand 1, single buffered']
    #allocation6 [shape = 's32[1]{0}', space=sflag, size = 0x4, scoped, tag = 'scoped memory for linear_forward.1']
    #allocation7 [shape = 'u8[8192]{0}', space=vmem, size = 0x2000, scoped, tag = 'output window, operand 0, single buffered']
    %8 = vsyncpa [#allocation3], 0
    %9 = vsyncpa [#allocation6], 0
    %10 = vsyncpa [#allocation4], 0
    // Predicated region
    $region2: #{linear_forward.1} parent=1 // pred_check
      _
    $region3: #{linear_forward.1} parent=1 // pred_check_branch
      %12 = sbr.rel (0) target = $region5
    $region4: #{linear_forward.1} parent=1 // pred_region
      %s14 = ssub.s32 256, 256
      %15 = vsyncadd [#allocation3], %s14
      %s16 = sshll.u32 [#allocation2], 4
      %s17 = int_to_ptr.vmem [resolvable:$true] %s16
      %22 = dma.hbm_to_vmem [thread:$0]  %s0, 256, %s17, [#allocation3], 128, 128, 8
    $region5: #{linear_forward.1} parent=1 // pred_fallthru
      _
    // Predicated region
    $region6: #{linear_forward.1} parent=1 // pred_check
      _
    $region7: #{linear_forward.1} parent=1 // pred_check_branch
      %24 = sbr.rel (0) target = $region9
    $region8: #{linear_forward.1} parent=1 // pred_region
      %s26 = ssub.s32 512, 512
      %27 = vsyncadd [#allocation6], %s26
      %s28 = sshll.u32 [#allocation5], 4
      %s29 = int_to_ptr.vmem [resolvable:$true] %s28
      %34 = dma.hbm_to_vmem [thread:$0]  %s1, 512, %s29, [#allocation6], 128, 128, 8
    $region9: #{linear_forward.1} parent=1 // pred_fallthru
      _
    // Predicated region
    $region10: #{linear_forward.1} parent=1 // pred_check
      _
    $region11: #{linear_forward.1} parent=1 // pred_check_branch
      %36 = sbr.rel (0) target = $region13
    $region12: #{linear_forward.1} parent=1 // pred_region
      _
    $region13: #{linear_forward.1} parent=1 // pred_fallthru
      _
    // Predicated region
    $region14: #{linear_forward.1} parent=1 // pred_check
      _
    $region15: #{linear_forward.1} parent=1 // pred_check_branch
      %38 = sbr.rel (0) target = $region17
    $region16: #{linear_forward.1} parent=1 // pred_region
      %39 = dma.done [#allocation3], 256
    $region17: #{linear_forward.1} parent=1 // pred_fallthru
      _
    // Predicated region
    $region18: #{linear_forward.1} parent=1 // pred_check
      _
    $region19: #{linear_forward.1} parent=1 // pred_check_branch
      %41 = sbr.rel (0) target = $region21
    $region20: #{linear_forward.1} parent=1 // pred_region
      %42 = dma.done [#allocation6], 512
    $region21: #{linear_forward.1} parent=1 // pred_fallthru
      _
    %p43 = scmp.eq.s32.totalorder 0, 0
    // Predicated region
    $region22: #{linear_forward.1} parent=1 // pred_check
      %p44 = pneg %p43
    $region23: #{linear_forward.1} parent=1 // pred_check_branch
      %46 = sbr.rel (%p44) target = $region25
    $region24: #{linear_forward.1} parent=1 // pred_region
      %v47 = vld [vmem:[%s2] sm:$0x1]
      %v49 = vlaneseq
      %v50 = vshrl.u32 %v49, 7
      %v51 = vsub.s32 0, %v50
      %v52 = vrot.slane %v47, %v51
      %vm54 = vcmask 523264
      %55 = vst.msk [vmem:[#allocation7] sm:$0xff] %vm54, %v52
      %56 = vst.msk [vmem:[#allocation7 + $0x8] sm:$0xff] %vm54, %v52
    $region25: #{linear_forward.1} parent=1 // pred_fallthru
      _
    %v57 = vld [vmem:[#allocation7] sm:$0xff]
    %v58 = vld [vmem:[#allocation7 + $0x8] sm:$0xff]
    %v59 = vld [vmem:[#allocation2] sm:$0xff]
    %v60 = vld [vmem:[#allocation2 + $0x8] sm:$0xff]
    %v61 = vld [vmem:[#allocation5] sm:$0xff]
    %v62 = vld [vmem:[#allocation5 + $0x8] sm:$0xff]
    %v63 = vld [vmem:[#allocation5 + $0x10] sm:$0xff]
    %v64 = vld [vmem:[#allocation5 + $0x18] sm:$0xff]
    %vm65 = vcmask 261120
    %v67 = vsel %vm65, %v59, 0
    %v70 = vsel %vm65, %v60, 0
    %72 = vmatprep.subr.mxu0 0.0
    %73 = vmatpush1.msra.mxu0 0.0
    %74 = vmatprep.subr.mxu0 0.0
    %75 = vmatpush1.msra.mxu0 0.0
    %76 = vmatprep.subr.mxu0 0.0
    %77 = vmatpush1.msra.mxu0 0.0
    %78 = vmatprep.subr.mxu0 0.0
    %79 = vmatpush1.msra.mxu0 0.0
    %80 = vmatprep.subr.mxu0 0.0
    %81 = vmatpush1.msra.mxu0 0.0
    %82 = vmatprep.subr.mxu0 0.0
    %83 = vmatpush1.msra.mxu0 0.0
    %84 = vmatprep.subr.mxu0 0.0
    %85 = vmatpush1.msra.mxu0 0.0
    %86 = vmatprep.subr.mxu0 0.0
    %87 = vmatpush1.msra.mxu0 0.0
    %88 = vmatprep.subr.mxu0 0.0
    %89 = vmatpush1.msra.mxu0 0.0
    %90 = vmatprep.subr.mxu0 0.0
    %91 = vmatpush1.msra.mxu0 0.0
    %92 = vmatprep.subr.mxu0 0.0
    %93 = vmatpush1.msra.mxu0 0.0
    %94 = vmatprep.subr.mxu0 0.0
    %95 = vmatpush1.msra.mxu0 0.0
    %96 = vmatprep.subr.mxu0 0.0
    %97 = vmatpush1.msra.mxu0 %v64
    %98 = vmatprep.subr.mxu0 0.0
    %99 = vmatpush1.msra.mxu0 %v63
    %100 = vmatprep.subr.mxu0 0.0
    %101 = vmatpush1.msra.mxu0 %v62
    %102 = vmatprep.subr.mxu0 0.0
    %103 = vmatpush1.msra.mxu0 %v61
    %104 = vmatprep.subr.mxu0 0.0
    %105 = vmatpush2.msra.mxu0 0.0
    %106 = vmatprep.subr.mxu0 0.0
    %107 = vmatpush2.msra.mxu0 0.0
    %108 = vmatprep.subr.mxu0 0.0
    %109 = vmatpush2.msra.mxu0 0.0
    %110 = vmatprep.subr.mxu0 0.0
    %111 = vmatpush2.msra.mxu0 0.0
    %112 = vmatprep.subr.mxu0 0.0
    %113 = vmatpush2.msra.mxu0 0.0
    %114 = vmatprep.subr.mxu0 0.0
    %115 = vmatpush2.msra.mxu0 0.0
    %116 = vmatprep.subr.mxu0 0.0
    %117 = vmatpush2.msra.mxu0 0.0
    %118 = vmatprep.subr.mxu0 0.0
    %119 = vmatpush2.msra.mxu0 0.0
    %120 = vmatprep.subr.mxu0 0.0
    %121 = vmatpush2.msra.mxu0 0.0
    %122 = vmatprep.subr.mxu0 0.0
    %123 = vmatpush2.msra.mxu0 0.0
    %124 = vmatprep.subr.mxu0 0.0
    %125 = vmatpush2.msra.mxu0 0.0
    %126 = vmatprep.subr.mxu0 0.0
    %127 = vmatpush2.msra.mxu0 0.0
    %128 = vmatprep.subr.mxu0 0.0
    %129 = vmatpush2.msra.mxu0 0.0
    %130 = vmatprep.subr.mxu0 0.0
    %131 = vmatpush2.msra.mxu0 0.0
    %132 = vmatprep.subr.mxu0 0.0
    %133 = vmatpush2.msra.mxu0 0.0
    %134 = vmatprep.subr.mxu0 0.0
    %135 = vmatpush2.msra.mxu0 0.0
    %136 = vmatprep.mubr.f32.mxu0 0.0
    %137 = vmatmul.mubr.f32.gmra.mxu0 %v67
    %v138 = vpop.f32.mrf.mxu0
    %v139 = vadd.f32 0.0, %v138
    %v140 = vpop.f32.mrf.mxu0
    %141 = vmatprep.mubr.f32.mxu0 0.0
    %142 = vmatmul.mubr.f32.gmra.mxu0 %v70
    %v143 = vpop.f32.mrf.mxu0
    %v144 = vadd.f32 0.0, %v143
    %v145 = vpop.f32.mrf.mxu0
    %146 = vdwg.mxu0
    %v147 = vadd.f32 %v57, %v139
    %v148 = vadd.f32 %v58, %v144
    %vm149 = vcmask 523264
    %150 = vst.msk [vmem:[#allocation7] sm:$0xff] %vm149, %v147
    %151 = vst.msk [vmem:[#allocation7 + $0x8] sm:$0xff] %vm149, %v148
    // Predicated region
    $region26: #{linear_forward.1} parent=1 // pred_check
      _
    $region27: #{linear_forward.1} parent=1 // pred_check_branch
      %153 = sbr.rel (0) target = $region29
    $region28: #{linear_forward.1} parent=1 // pred_region
      %s155 = ssub.s32 256, 256
      %156 = vsyncadd [#allocation4], %s155
      %s157 = sshll.u32 [#allocation7], 4
      %s158 = int_to_ptr.vmem [resolvable:$true] %s157
      %163 = dma.vmem_to_hbm [thread:$0]  %s158, 256, %s3, [#allocation4], 128, 128, 8
    $region29: #{linear_forward.1} parent=1 // pred_fallthru
      _
    // Predicated region
    $region30: #{linear_forward.1} parent=1 // pred_check
      _
    $region31: #{linear_forward.1} parent=1 // pred_check_branch
      %165 = sbr.rel (0) target = $region33
    $region32: #{linear_forward.1} parent=1 // pred_region
      %166 = dma.done [#allocation4], 256
    $region33: #{linear_forward.1} parent=1 // pred_fallthru
      _
    %167 = vsyncpa [#allocation3], 1
    %168 = vsyncpa [#allocation6], 1
    %169 = vsyncpa [#allocation4], 1

</llo_original>
